<compile_context>
chip_gen: v7x
topology: tpu7x:2x2x1
jax: 0.10.0
libtpu: 0.0.40
codegen_flags: <defaults>
</compile_context>

<pallas_src>
import functools

import jax
import jax.numpy as jnp
from jax.experimental import pallas as pl
from jax.experimental.pallas import tpu as pltpu

_PAIRWISE_EPS = 1e-6  # matches torch.nn.functional.pairwise_distance default eps


def _vmem_capacity_bytes() -> int:
    """Physical per-core VMEM; conservative 64 MiB (v7x) if the query fails."""
    try:
        return int(pltpu.get_tpu_info().vmem_capacity_bytes)
    except Exception:
        return 64 << 20


def _round_up(x: int, m: int) -> int:
    return ((x + m - 1) // m) * m


def _contrastive_loss_kernel(o1_ref, o2_ref, lbl_ref, out_ref, acc_ref, *,
                             margin, total_b, tile_b, tiles_per_core,
                             needs_mask):
    c = pl.program_id(0)   # "parallel" core-lane axis
    j = pl.program_id(1)   # "arbitrary" reduction axis over batch tiles

    @pl.when(j == 0)
    def _():
        acc_ref[...] = jnp.zeros_like(acc_ref)

    # Upcast right after the (narrow) DMA; accumulate in f32.
    o1 = o1_ref[...].astype(jnp.float32)            # (tile_b, D)
    o2 = o2_ref[...].astype(jnp.float32)            # (tile_b, D)
    lbl = lbl_ref[...].astype(jnp.float32)          # (tile_b, 1)

    # F.pairwise_distance adds eps to the difference before the norm.
    diff = o1 - o2 + _PAIRWISE_EPS                  # (tile_b, D)
    d2 = jnp.sum(diff * diff, axis=-1, keepdims=True)   # (tile_b, 1)
    d = jnp.sqrt(d2)                                # (tile_b, 1)
    clamped = jnp.maximum(margin - d, 0.0)          # (tile_b, 1)

    # Use d2 directly for the similar-pair term (saves the dependent
    # re-square of the sqrt result; identical to the reference within 1e-5).
    per_row = (1.0 - lbl) * d2 + lbl * (clamped * clamped)   # (tile_b, 1)

    if needs_mask:
        # Mask rows past the true batch size (padded tail tile and/or
        # clamped duplicate blocks when the tile count is odd across cores).
        base = (c * tiles_per_core + j) * tile_b
        row = jax.lax.broadcasted_iota(jnp.int32, per_row.shape, 0) + base
        per_row = jnp.where(row < total_b, per_row, 0.0)

    # Plain VPU vector add per step; single XLU reduce happens once below.
    acc_ref[...] = acc_ref[...] + per_row

    @pl.when(j == pl.num_programs(1) - 1)
    def _():
        partial = jnp.sum(acc_ref[...])             # one reduce per core lane
        out_ref[...] = jnp.broadcast_to(partial, out_ref.shape).astype(
            out_ref.dtype)


def contrastive_loss(output1: jax.Array,
                     output2: jax.Array,
                     label: jax.Array,
                     *,
                     margin: float = 1.0,
                     tile_b: int | None = None) -> jax.Array:
    """output1, output2: (B, D); label: (B,). Returns scalar f32 loss."""
    B, D = output1.shape
    assert output2.shape == (B, D)
    label2d = label.reshape(B, 1)

    itemsize = jnp.dtype(output1.dtype).itemsize
    lbl_itemsize = jnp.dtype(label2d.dtype).itemsize

    # Sublane packing of the input dtype: 8 rows (f32), 16 (bf16), 32 (int8).
    packing = max(8, 32 // max(itemsize, 1))

    # Generation-aware per-input tile target (review: ~6 MiB on 128-MiB-VMEM
    # chips, ~4 MiB on v7x's 64 MiB per core).
    vmem_cap = _vmem_capacity_bytes()
    per_input_target = (6 << 20) if vmem_cap >= (100 << 20) else (4 << 20)

    if tile_b is None:
        tile_b = per_input_target // max(D * itemsize, 1)
    tile_b = max(packing, (tile_b // packing) * packing)   # packing-aligned
    tile_b = min(tile_b, _round_up(B, packing))            # never larger than needed

    t_total = (B + tile_b - 1) // tile_b                   # total batch tiles

    # Leading "parallel" axis of 2: splits tiles across the two TensorCores on
    # v7x; on 1-TC chips it simply runs both lanes sequentially (same work).
    nc = 2 if t_total >= 2 else 1
    tpc = (t_total + nc - 1) // nc                          # tiles per core lane
    needs_clamp = nc * tpc > t_total
    needs_mask = nc * tpc * tile_b > B

    if needs_clamp:
        # Overrunning steps re-read the last valid block; their rows are
        # fully masked in the kernel (logical row index >= B).
        def in_map(c, j):
            return (jnp.minimum(c * tpc + j, t_total - 1), 0)
    else:
        def in_map(c, j):
            return (c * tpc + j, 0)

    out_map = lambda c, j: (c, 0, 0)

    # VMEM accounting: 2 inputs x 2 pipeline buffers x tile + label + acc.
    emb_tile_bytes = tile_b * D * itemsize
    vmem_usage = (2 * 2 * emb_tile_bytes
                  + 2 * tile_b * lbl_itemsize
                  + tile_b * 4
                  + nc * 8 * 128 * 4)
    vmem_limit = int(min(vmem_cap * 3 // 4, vmem_usage + (16 << 20)))

    cost = pl.CostEstimate(
        flops=4 * B * D + 8 * B,
        transcendentals=B,
        bytes_accessed=2 * B * D * itemsize + B * lbl_itemsize + nc * 8 * 128 * 4,
    )

    kernel = functools.partial(
        _contrastive_loss_kernel,
        margin=float(margin), total_b=B, tile_b=tile_b,
        tiles_per_core=tpc, needs_mask=needs_mask)

    partials = pl.pallas_call(
        kernel,
        out_shape=jax.ShapeDtypeStruct((nc, 8, 128), jnp.float32),
        grid=(nc, tpc),
        in_specs=[
            pl.BlockSpec((tile_b, D), in_map),
            pl.BlockSpec((tile_b, D), in_map),
            pl.BlockSpec((tile_b, 1), in_map),
        ],
        out_specs=pl.BlockSpec((1, 8, 128), out_map),
        scratch_shapes=[pltpu.VMEM((tile_b, 1), jnp.float32)],
        compiler_params=pltpu.CompilerParams(
            dimension_semantics=("parallel", "arbitrary"),
            vmem_limit_bytes=vmem_limit),
        cost_estimate=cost,
    )(output1, output2, label2d)

    # Tiny XLA epilogue: sum the per-core partial sums, divide by true B.
    return jnp.sum(partials[:, 0, 0]) * (1.0 / B)


def _reference(output1, output2, label, margin=1.0):
    # Pure-JAX reference mirroring the PyTorch forward exactly.
    o1 = output1.astype(jnp.float32)
    o2 = output2.astype(jnp.float32)
    d = jnp.sqrt(jnp.sum((o1 - o2 + _PAIRWISE_EPS) ** 2, axis=-1))
    lbl = label.astype(jnp.float32)
    return jnp.mean((1.0 - lbl) * d ** 2
                    + lbl * jnp.maximum(margin - d, 0.0) ** 2)


if __name__ == "__main__":
    key = jax.random.PRNGKey(0)
    k1, k2, k3 = jax.random.split(key, 3)

    # 1) Multi-tile, 2-lane core split, padded tail (mask path).
    B, D = 120, 32
    output1 = jax.random.normal(k1, (B, D), dtype=jnp.float32)
    output2 = jax.random.normal(k2, (B, D), dtype=jnp.float32)
    label = jax.random.bernoulli(k3, 0.5, (B,)).astype(jnp.float32)
    loss = contrastive_loss(output1, output2, label, tile_b=64)
    jax.block_until_ready(loss)
    ref = _reference(output1, output2, label)
    assert jnp.allclose(loss, ref, rtol=1e-5, atol=1e-5), (loss, ref)

    # 2) Original toy shape, default (single-tile, single-lane) tiling.
    B2, D2 = 8, 32
    o1 = jax.random.normal(k1, (B2, D2), dtype=jnp.float32)
    o2 = jax.random.normal(k2, (B2, D2), dtype=jnp.float32)
    lb = jax.random.bernoulli(k3, 0.5, (B2,)).astype(jnp.float32)
    loss2 = contrastive_loss(o1, o2, lb)
    jax.block_until_ready(loss2)
    ref2 = _reference(o1, o2, lb)
    assert jnp.allclose(loss2, ref2, rtol=1e-5, atol=1e-5), (loss2, ref2)

    # 3) Odd tile count -> clamped index_map on the second core lane.
    B3, D3 = 300, 32
    o1c = jax.random.normal(k1, (B3, D3), dtype=jnp.float32)
    o2c = jax.random.normal(k2, (B3, D3), dtype=jnp.float32)
    lbc = jax.random.bernoulli(k3, 0.5, (B3,)).astype(jnp.float32)
    loss3 = contrastive_loss(o1c, o2c, lbc, tile_b=64)
    jax.block_until_ready(loss3)
    ref3 = _reference(o1c, o2c, lbc)
    assert jnp.allclose(loss3, ref3, rtol=1e-5, atol=1e-5), (loss3, ref3)

    # 4) bf16 inputs: 16-row sublane packing + in-kernel upcast.
    B4, D4 = 96, 64
    o1b = jax.random.normal(k1, (B4, D4), dtype=jnp.bfloat16)
    o2b = jax.random.normal(k2, (B4, D4), dtype=jnp.bfloat16)
    lbb = jax.random.bernoulli(k3, 0.5, (B4,)).astype(jnp.float32)
    loss4 = contrastive_loss(o1b, o2b, lbb, tile_b=32)
    jax.block_until_ready(loss4)
    ref4 = _reference(o1b, o2b, lbb)
    assert jnp.allclose(loss4, ref4, rtol=1e-3, atol=1e-3), (loss4, ref4)

    print("KERNEL_OK")
</pallas_src>

<mosaic_0001>
module attributes {stable_mosaic.version = 11 : i64} {
  func.func @_contrastive_loss_kernel(%arg0: i32, %arg1: i32, %arg2: memref<64x32xf32, #tpu.memory_space<vmem>>, %arg3: memref<64x32xf32, #tpu.memory_space<vmem>>, %arg4: memref<64x1xf32, #tpu.memory_space<vmem>>, %arg5: memref<1x8x128xf32, #tpu.memory_space<vmem>>, %arg6: memref<64x1xf32, #tpu.memory_space<vmem>>) attributes {dimension_semantics = [#tpu.dimension_semantics<parallel>, #tpu.dimension_semantics<arbitrary>], iteration_bounds = array<i64: 2, 1>, scalar_prefetch = 0 : i64, scratch_operands = 1 : i64, tpu.core_type = #tpu.core_type<tc>, window_params = [{transform_indices = @transform_0, window_bounds = array<i64: 64, 32>}, {transform_indices = @transform_1, window_bounds = array<i64: 64, 32>}, {transform_indices = @transform_2, window_bounds = array<i64: 64, 1>}, {transform_indices = @transform_3, window_bounds = array<i64: 1, 8, 128>}]} {
    %c0_i32 = arith.constant 0 : i32
    %0 = arith.cmpi eq, %arg1, %c0_i32 : i32
    %1 = arith.extui %0 : i1 to i32
    %c0_i32_0 = arith.constant 0 : i32
    %2 = arith.cmpi ne, %1, %c0_i32_0 : i32
    scf.if %2 {
      %cst_17 = arith.constant 0.000000e+00 : f32
      %39 = vector.broadcast %cst_17 : f32 to vector<64x1xf32>
      %c0_18 = arith.constant 0 : index
      %c0_19 = arith.constant 0 : index
      %40 = vector.load %arg6[%c0_18, %c0_19] : memref<64x1xf32, #tpu.memory_space<vmem>>, vector<64x1xf32>
      tpu.vector_store %arg6[%c0_18, %c0_19], %39 {strides = array<i32>} : memref<64x1xf32, #tpu.memory_space<vmem>>, vector<64x1xf32>,
    } else {
    }
    %c0 = arith.constant 0 : index
    %c0_1 = arith.constant 0 : index
    %3 = vector.load %arg2[%c0, %c0_1] : memref<64x32xf32, #tpu.memory_space<vmem>>, vector<64x32xf32>
    %c0_2 = arith.constant 0 : index
    %c0_3 = arith.constant 0 : index
    %4 = vector.load %arg3[%c0_2, %c0_3] : memref<64x32xf32, #tpu.memory_space<vmem>>, vector<64x32xf32>
    %c0_4 = arith.constant 0 : index
    %c0_5 = arith.constant 0 : index
    %5 = vector.load %arg4[%c0_4, %c0_5] : memref<64x1xf32, #tpu.memory_space<vmem>>, vector<64x1xf32>
    %6 = arith.subf %3, %4 : vector<64x32xf32>
    %cst = arith.constant 9.99999997E-7 : f32
    %7 = vector.broadcast %cst : f32 to vector<64x32xf32>
    %8 = arith.addf %6, %7 : vector<64x32xf32>
    %9 = arith.mulf %8, %8 : vector<64x32xf32>
    %cst_6 = arith.constant dense<0.000000e+00> : vector<64xf32>
    %10 = vector.multi_reduction <add>, %9, %cst_6 [1] : vector<64x32xf32> to vector<64xf32>
    %11 = vector.shape_cast %10 : vector<64xf32> to vector<64x1xf32>
    %12 = math.sqrt %11 : vector<64x1xf32>
    %cst_7 = arith.constant 1.000000e+00 : f32
    %13 = vector.broadcast %cst_7 : f32 to vector<64x1xf32>
    %14 = arith.subf %13, %12 : vector<64x1xf32>
    %cst_8 = arith.constant 0.000000e+00 : f32
    %15 = vector.broadcast %cst_8 : f32 to vector<64x1xf32>
    %16 = arith.maximumf %14, %15 : vector<64x1xf32>
    %cst_9 = arith.constant 1.000000e+00 : f32
    %17 = vector.broadcast %cst_9 : f32 to vector<64x1xf32>
    %18 = arith.subf %17, %5 : vector<64x1xf32>
    %19 = arith.mulf %18, %11 : vector<64x1xf32>
    %20 = arith.mulf %16, %16 : vector<64x1xf32>
    %21 = arith.mulf %5, %20 : vector<64x1xf32>
    %22 = arith.addf %19, %21 : vector<64x1xf32>
    %c1_i32 = arith.constant 1 : i32
    %23 = arith.muli %arg0, %c1_i32 : i32
    %24 = arith.addi %23, %arg1 : i32
    %c64_i32 = arith.constant 64 : i32
    %25 = arith.muli %24, %c64_i32 : i32
    %26 = tpu.iota {dimensions = array<i32: 0>} : vector<64x1xi32>
    %27 = vector.broadcast %25 : i32 to vector<64x1xi32>
    %28 = arith.addi %26, %27 : vector<64x1xi32>
    %c120_i32 = arith.constant 120 : i32
    %29 = vector.broadcast %c120_i32 : i32 to vector<64x1xi32>
    %30 = arith.cmpi slt, %28, %29 : vector<64x1xi32>
    %cst_10 = arith.constant 0.000000e+00 : f32
    %31 = vector.broadcast %cst_10 : f32 to vector<64x1xf32>
    %32 = arith.select %30, %22, %31 : vector<64x1xi1>, vector<64x1xf32>
    %c0_11 = arith.constant 0 : index
    %c0_12 = arith.constant 0 : index
    %33 = vector.load %arg6[%c0_11, %c0_12] : memref<64x1xf32, #tpu.memory_space<vmem>>, vector<64x1xf32>
    %34 = arith.addf %33, %32 : vector<64x1xf32>
    %c0_13 = arith.constant 0 : index
    %c0_14 = arith.constant 0 : index
    %35 = vector.load %arg6[%c0_13, %c0_14] : memref<64x1xf32, #tpu.memory_space<vmem>>, vector<64x1xf32>
    tpu.vector_store %arg6[%c0_13, %c0_14], %34 {strides = array<i32>} : memref<64x1xf32, #tpu.memory_space<vmem>>, vector<64x1xf32>,
    %c0_i32_15 = arith.constant 0 : i32
    %36 = arith.cmpi eq, %arg1, %c0_i32_15 : i32
    %37 = arith.extui %36 : i1 to i32
    %c0_i32_16 = arith.constant 0 : i32
    %38 = arith.cmpi ne, %37, %c0_i32_16 : i32
    scf.if %38 {
      %c0_17 = arith.constant 0 : index
      %c0_18 = arith.constant 0 : index
      %39 = vector.load %arg6[%c0_17, %c0_18] : memref<64x1xf32, #tpu.memory_space<vmem>>, vector<64x1xf32>
      %40 = vector.shape_cast %39 : vector<64x1xf32> to vector<1x64x1xf32>
      %cst_19 = arith.constant dense<0.000000e+00> : vector<1xf32>
      %41 = vector.multi_reduction <add>, %40, %cst_19 [1, 2] : vector<1x64x1xf32> to vector<1xf32>
      %42 = vector.shape_cast %41 : vector<1xf32> to vector<1x1x1xf32>
      %43 = vector.extract %42[0, 0, 0] : f32 from vector<1x1x1xf32>
      %44 = vector.broadcast %43 : f32 to vector<1x8x128xf32>
      %c0_20 = arith.constant 0 : index
      %c0_21 = arith.constant 0 : index
      %c0_22 = arith.constant 0 : index
      %45 = vector.load %arg5[%c0_20, %c0_21, %c0_22] : memref<1x8x128xf32, #tpu.memory_space<vmem>>, vector<1x8x128xf32>
      tpu.vector_store %arg5[%c0_20, %c0_21, %c0_22], %44 {strides = array<i32>} : memref<1x8x128xf32, #tpu.memory_space<vmem>>, vector<1x8x128xf32>,
    } else {
    }
    return
  }
  func.func @transform_0(%arg0: i32, %arg1: i32) -> (i32, i32) {
    %c1_i32 = arith.constant 1 : i32
    %0 = arith.muli %arg0, %c1_i32 : i32
    %1 = arith.addi %0, %arg1 : i32
    %c0_i32 = arith.constant 0 : i32
    %c0_i32_0 = arith.constant 0 : i32
    return %1, %c0_i32 : i32, i32
  }
  func.func @transform_1(%arg0: i32, %arg1: i32) -> (i32, i32) {
    %c1_i32 = arith.constant 1 : i32
    %0 = arith.muli %arg0, %c1_i32 : i32
    %1 = arith.addi %0, %arg1 : i32
    %c0_i32 = arith.constant 0 : i32
    %c0_i32_0 = arith.constant 0 : i32
    return %1, %c0_i32 : i32, i32
  }
  func.func @transform_2(%arg0: i32, %arg1: i32) -> (i32, i32) {
    %c1_i32 = arith.constant 1 : i32
    %0 = arith.muli %arg0, %c1_i32 : i32
    %1 = arith.addi %0, %arg1 : i32
    %c0_i32 = arith.constant 0 : i32
    %c0_i32_0 = arith.constant 0 : i32
    return %1, %c0_i32 : i32, i32
  }
  func.func @transform_3(%arg0: i32, %arg1: i32) -> (i32, i32, i32) {
    %c0_i32 = arith.constant 0 : i32
    %c0_i32_0 = arith.constant 0 : i32
    %c0_i32_1 = arith.constant 0 : i32
    return %arg0, %c0_i32, %c0_i32_0 : i32, i32, i32
  }
}

</mosaic_0001>

<llo_original>
// kernel: tpu_custom_call.1
$region0: #{tpu_custom_call.1}
  #allocation0 [shape = 'u32[]', space=smem, size = 0x4, offset = 0x4, fixed_abs, tag = 'smem constant byte address 0x4 - core index']
  #allocation1 [shape = 'u32[144,128]{1,0:T(1,128)}', space=vmem, size = 0x12000, scoped, tag = 'internal scratch']
  #allocation2 [shape = 'f32[64,1]{1,0:T(8,128)}', space=vmem, size = 0x8000, scoped, tag = 'scratch operand']
  %s0 = inlined_call_operand.vmem [shape: f32[120,32], index: 0, kind: input, shape index: {}]
  %s1 = inlined_call_operand.vmem [shape: f32[120,32], index: 1, kind: input, shape index: {}]
  %s2 = inlined_call_operand.vmem [shape: f32[120,1], index: 2, kind: input, shape index: {}]
  %s3 = inlined_call_operand.hbm [shape: f32[2,8,128], index: 3, kind: output, shape index: {}]
  %s4 = sld [smem:[#allocation0]]
  $region53: #{tpu_custom_call.1} parent=0
    _
  %s6 = ssub.s32 1, %s4
  %s7 = scalar_select 0, %s6, %s4
  $region1: #{tpu_custom_call.1} parent=0
    #allocation3 [shape = 'u8[8192]{0}', space=vmem, size = 0x2000, scoped, tag = 'output window, operand 0']
    #allocation4 [shape = 's32[2]{0}', space=sflag, size = 0x8, scoped, tag = 'scoped memory for tpu_custom_call.1']
    %8 = vsyncpa [#allocation4], 0
    %s9 = scalar_lea.sflag [#allocation4], 1
    %10 = vsyncpa %s9, 0
    loop: start=0, step=1, limit=4
    $region2: #{tpu_custom_call.1} parent=1 // loop_pre_header
      _
    $region3: #{tpu_custom_call.1} parent=1 // loop_header
      %s12 = sphi 0, %s16
      %p13 = scmp.ge.s32.totalorder %s12, 4
      %s19 = sphi 0, %s31
      %s20 = sphi 0, %s27
      %s21 = sphi 0, %s19
      %s22 = sphi 0, %s20
      %s23 = sphi 0, %s21
      %s24 = sphi 0, %s22
      %s36 = sphi 0, %s38
      %s39 = sphi 0, %s36
      %s40 = sphi 0, %s39
      %s56 = sphi 0, %s40
      %s64 = sphi 0, %s66
      %s67 = sphi 0, %s64
      %s68 = sphi 0, %s67
      %s84 = sphi 0, %s68
      %s92 = sphi 0, %s94
      %s95 = sphi 0, %s92
      %s96 = sphi 0, %s95
      %s112 = sphi 0, %s96
      %s118 = sphi 0, %s120
      %s121 = sphi 0, %s118
      %s122 = sphi 0, %s121
      %s138 = sphi 0, %s122
    $region4: #{tpu_custom_call.1} parent=1 // loop_header_branch
      %15 = sbr.rel (%p13) target = $region8
    $region5: #{tpu_custom_call.1} parent=1 // loop_body
      %s17 = ssub.s32 %s12, 1
      %s18 = ssub.s32 %s12, 2
      %s25 = sadd.s32 1, %s20
      %p26 = scmp.ge.s32.totalorder %s25, 1
      %s27 = scalar_select %p26, 0, %s25
      %s28 = sadd.s32 1, %s19
      %s29 = scalar_select %p26, %s28, %s19
      %p30 = scmp.ge.s32.totalorder %s29, 2
      %s31 = scalar_select %p30, 0, %s29
      %s32 = sadd.s32 %s19, %s20
      %s33 = sadd.s32 %s31, %s27
      %s34 = ssub.s32 %s32, %s33
      %p35 = scmp.eq.s32.totalorder %s34, 0
      %s37 = sadd.s32 %s36, 1
      %s38 = scalar_select %p35, %s36, %s37
      %p41 = pneg %p35
      %p42 = scmp.eq.s32.totalorder %s12, 1
      %p43 = por %p41, %p42
      %p44 = scmp.ne.s32.totalorder %s36, %s39
      %p45 = scmp.eq.s32.totalorder %s12, 0
      %p46 = por %p44, %p45
      %p47 = scmp.ne.s32.totalorder %s36, %s39
      %p48 = scmp.eq.s32.totalorder %s17, 1
      %p49 = por %p47, %p48
      %p50 = scmp.ne.s32.totalorder %s39, %s40
      %p51 = scmp.eq.s32.totalorder %s17, 0
      %p52 = por %p50, %p51
      %p53 = scmp.ne.s32.totalorder %s39, %s40
      %p54 = scmp.eq.s32.totalorder %s18, 1
      %p55 = por %p53, %p54
      %p57 = scmp.ne.s32.totalorder %s40, %s56
      %p58 = scmp.eq.s32.totalorder %s18, 0
      %p59 = por %p57, %p58
      %s60 = sadd.s32 %s19, %s20
      %s61 = sadd.s32 %s31, %s27
      %s62 = ssub.s32 %s60, %s61
      %p63 = scmp.eq.s32.totalorder %s62, 0
      %s65 = sadd.s32 %s64, 1
      %s66 = scalar_select %p63, %s64, %s65
      %p69 = pneg %p63
      %p70 = scmp.eq.s32.totalorder %s12, 1
      %p71 = por %p69, %p70
      %p72 = scmp.ne.s32.totalorder %s64, %s67
      %p73 = scmp.eq.s32.totalorder %s12, 0
      %p74 = por %p72, %p73
      %p75 = scmp.ne.s32.totalorder %s64, %s67
      %p76 = scmp.eq.s32.totalorder %s17, 1
      %p77 = por %p75, %p76
      %p78 = scmp.ne.s32.totalorder %s67, %s68
      %p79 = scmp.eq.s32.totalorder %s17, 0
      %p80 = por %p78, %p79
      %p81 = scmp.ne.s32.totalorder %s67, %s68
      %p82 = scmp.eq.s32.totalorder %s18, 1
      %p83 = por %p81, %p82
      %p85 = scmp.ne.s32.totalorder %s68, %s84
      %p86 = scmp.eq.s32.totalorder %s18, 0
      %p87 = por %p85, %p86
      %s88 = sadd.s32 %s19, %s20
      %s89 = sadd.s32 %s31, %s27
      %s90 = ssub.s32 %s88, %s89
      %p91 = scmp.eq.s32.totalorder %s90, 0
      %s93 = sadd.s32 %s92, 1
      %s94 = scalar_select %p91, %s92, %s93
      %p97 = pneg %p91
      %p98 = scmp.eq.s32.totalorder %s12, 1
      %p99 = por %p97, %p98
      %p100 = scmp.ne.s32.totalorder %s92, %s95
      %p101 = scmp.eq.s32.totalorder %s12, 0
      %p102 = por %p100, %p101
      %p103 = scmp.ne.s32.totalorder %s92, %s95
      %p104 = scmp.eq.s32.totalorder %s17, 1
      %p105 = por %p103, %p104
      %p106 = scmp.ne.s32.totalorder %s95, %s96
      %p107 = scmp.eq.s32.totalorder %s17, 0
      %p108 = por %p106, %p107
      %p109 = scmp.ne.s32.totalorder %s95, %s96
      %p110 = scmp.eq.s32.totalorder %s18, 1
      %p111 = por %p109, %p110
      %p113 = scmp.ne.s32.totalorder %s96, %s112
      %p114 = scmp.eq.s32.totalorder %s18, 0
      %p115 = por %p113, %p114
      %s116 = ssub.s32 %s19, %s31
      %p117 = scmp.eq.s32.totalorder %s116, 0
      %s119 = sadd.s32 %s118, 1
      %s120 = scalar_select %p117, %s118, %s119
      %p123 = pneg %p117
      %p124 = scmp.eq.s32.totalorder %s12, 1
      %p125 = por %p123, %p124
      %p126 = scmp.ne.s32.totalorder %s118, %s121
      %p127 = scmp.eq.s32.totalorder %s12, 0
      %p128 = por %p126, %p127
      %p129 = scmp.ne.s32.totalorder %s118, %s121
      %p130 = scmp.eq.s32.totalorder %s17, 1
      %p131 = por %p129, %p130
      %p132 = scmp.ne.s32.totalorder %s121, %s122
      %p133 = scmp.eq.s32.totalorder %s17, 0
      %p134 = por %p132, %p133
      %p135 = scmp.ne.s32.totalorder %s121, %s122
      %p136 = scmp.eq.s32.totalorder %s18, 1
      %p137 = por %p135, %p136
      %p139 = scmp.ne.s32.totalorder %s122, %s138
      %p140 = scmp.eq.s32.totalorder %s18, 0
      %p141 = por %p139, %p140
      %p142 = scmp.le.s32.totalorder 1, %s12
      %p143 = scmp.lt.s32.totalorder %s12, 3
      %p144 = pnand %p142, %p143
      %p145 = pneg %p144
      // Predicated region
      $region9: #{tpu_custom_call.1} parent=5 // pred_check
        _
      $region10: #{tpu_custom_call.1} parent=5 // pred_check_branch
        %147 = sbr.rel (%p144) target = $region12
      $region11: #{tpu_custom_call.1} parent=5 // pred_region
        %s148 = ssub.s32 %s12, 1
      $region12: #{tpu_custom_call.1} parent=5 // pred_fallthru
        _
      %p149 = scmp.lt.s32.totalorder %s12, 2
      // Predicated region
      $region13: #{tpu_custom_call.1} parent=5 // pred_check
        %p150 = pneg %p149
      $region14: #{tpu_custom_call.1} parent=5 // pred_check_branch
        %152 = sbr.rel (%p150) target = $region16
      $region15: #{tpu_custom_call.1} parent=5 // pred_region
        // Predicated region
        $region17: #{tpu_custom_call.1} parent=15 // pred_check
          %p153 = pneg %p46
        $region18: #{tpu_custom_call.1} parent=15 // pred_check_branch
          %155 = sbr.rel (%p153) target = $region20
        $region19: #{tpu_custom_call.1} parent=15 // pred_region
          %s156 = sadd.s32 %s19, %s20
          %s157 = smul.u32 8, %s156
          %s158 = ssub.s32 15, %s157
          %p159 = scmp.lt.s32.totalorder %s158, 8
          %s160 = scalar_select %p159, %s158, 8
          %s161 = smul.u32 128, %s160
          %p162 = scmp.lt.s32.totalorder %s157, 14
          %s163 = scalar_select %p162, %s157, 14
          %s164 = smul.addr %s163, 8
          %s165 = scalar_lea.vmem %s0, %s164
          %s166 = sadd.s32 %s19, %s20
          %s167 = smul.u32 8, %s166
          %s168 = ssub.s32 15, %s167
          %p169 = scmp.lt.s32.totalorder %s168, 8
          %s170 = scalar_select %p169, %s168, 8
          %s171 = smul.u32 128, %s170
        $region20: #{tpu_custom_call.1} parent=15 // pred_fallthru
          _
        // Predicated region
        $region21: #{tpu_custom_call.1} parent=15 // pred_check
          %p172 = pneg %p74
        $region22: #{tpu_custom_call.1} parent=15 // pred_check_branch
          %174 = sbr.rel (%p172) target = $region24
        $region23: #{tpu_custom_call.1} parent=15 // pred_region
          %s175 = sadd.s32 %s19, %s20
          %s176 = smul.u32 8, %s175
          %s177 = ssub.s32 15, %s176
          %p178 = scmp.lt.s32.totalorder %s177, 8
          %s179 = scalar_select %p178, %s177, 8
          %s180 = smul.u32 128, %s179
          %p181 = scmp.lt.s32.totalorder %s176, 14
          %s182 = scalar_select %p181, %s176, 14
          %s183 = smul.addr %s182, 8
          %s184 = scalar_lea.vmem %s1, %s183
          %s185 = sadd.s32 %s19, %s20
          %s186 = smul.u32 8, %s185
          %s187 = ssub.s32 15, %s186
          %p188 = scmp.lt.s32.totalorder %s187, 8
          %s189 = scalar_select %p188, %s187, 8
          %s190 = smul.u32 128, %s189
        $region24: #{tpu_custom_call.1} parent=15 // pred_fallthru
          _
        // Predicated region
        $region25: #{tpu_custom_call.1} parent=15 // pred_check
          %p191 = pneg %p102
        $region26: #{tpu_custom_call.1} parent=15 // pred_check_branch
          %193 = sbr.rel (%p191) target = $region28
        $region27: #{tpu_custom_call.1} parent=15 // pred_region
          %s194 = sadd.s32 %s19, %s20
          %s195 = smul.u32 8, %s194
          %s196 = ssub.s32 15, %s195
          %p197 = scmp.lt.s32.totalorder %s196, 8
          %s198 = scalar_select %p197, %s196, 8
          %s199 = smul.u32 128, %s198
          %p200 = scmp.lt.s32.totalorder %s195, 14
          %s201 = scalar_select %p200, %s195, 14
          %s202 = smul.addr %s201, 8
          %s203 = scalar_lea.vmem %s2, %s202
          %s204 = sadd.s32 %s19, %s20
          %s205 = smul.u32 8, %s204
          %s206 = ssub.s32 15, %s205
          %p207 = scmp.lt.s32.totalorder %s206, 8
          %s208 = scalar_select %p207, %s206, 8
          %s209 = smul.u32 128, %s208
        $region28: #{tpu_custom_call.1} parent=15 // pred_fallthru
          _
      $region16: #{tpu_custom_call.1} parent=5 // pred_fallthru
        _
      %p210 = scmp.le.s32.totalorder 1, %s12
      %p211 = scmp.lt.s32.totalorder %s12, 3
      %p212 = pnand %p210, %p211
      %p213 = pneg %p212
      // Predicated region
      $region29: #{tpu_custom_call.1} parent=5 // pred_check
        _
      $region30: #{tpu_custom_call.1} parent=5 // pred_check_branch
        %215 = sbr.rel (%p212) target = $region32
      $region31: #{tpu_custom_call.1} parent=5 // pred_region
        %s216 = ssub.s32 %s12, 1
        %s217 = sadd.s32 %s21, %s22
        %s218 = smul.u32 8, %s217
        %s219 = ssub.s32 15, %s218
        %p220 = scmp.lt.s32.totalorder %s219, 8
        %s221 = scalar_select %p220, %s219, 8
        %s222 = smul.u32 128, %s221
        %p223 = scmp.lt.s32.totalorder %s218, 14
        %s224 = scalar_select %p223, %s218, 14
        %s225 = smul.addr %s224, 8
        %s226 = scalar_lea.vmem %s0, %s225
        %p227 = pneg %p52
        %p228 = pneg %p49
        %s229 = sadd.s32 %s21, %s22
        %s230 = smul.u32 8, %s229
        %s231 = ssub.s32 15, %s230
        %p232 = scmp.lt.s32.totalorder %s231, 8
        %s233 = scalar_select %p232, %s231, 8
        %s234 = smul.u32 128, %s233
        %p235 = scmp.lt.s32.totalorder %s230, 14
        %s236 = scalar_select %p235, %s230, 14
        %s237 = smul.addr %s236, 8
        %s238 = scalar_lea.vmem %s1, %s237
        %p239 = pneg %p80
        %p240 = pneg %p77
        %s241 = sadd.s32 %s21, %s22
        %s242 = smul.u32 8, %s241
        %s243 = ssub.s32 15, %s242
        %p244 = scmp.lt.s32.totalorder %s243, 8
        %s245 = scalar_select %p244, %s243, 8
        %s246 = smul.u32 128, %s245
        %p247 = scmp.lt.s32.totalorder %s242, 14
        %s248 = scalar_select %p247, %s242, 14
        %s249 = smul.addr %s248, 8
        %s250 = scalar_lea.vmem %s2, %s249
        %p251 = pneg %p108
        %p252 = pneg %p105
        %p253 = pneg %p134
        %p254 = pneg %p131
        %s255 = sand.u32 %s121, 1
        %s256 = scalar_lea.sflag [#allocation4], %s255
        %s257 = sand.u32 %s121, 1
        %s258 = smul.addr %s257, 8
        %s259 = scalar_lea.vmem [#allocation3], %s258
        %s260 = sadd.s32 %s21, %s22
        %s261 = smul.u32 8, %s260
        %s262 = ssub.s32 15, %s261
        %p263 = scmp.lt.s32.totalorder %s262, 8
        %s264 = scalar_select %p263, %s262, 8
        %s265 = smul.u32 128, %s264
        %p266 = scmp.lt.s32.totalorder %s261, 14
        %s267 = scalar_select %p266, %s261, 14
        %s268 = smul.addr %s267, 8
        %s269 = scalar_lea.vmem %s0, %s268
        %s270 = sadd.s32 %s21, %s22
        %s271 = smul.u32 8, %s270
        %s272 = ssub.s32 15, %s271
        %p273 = scmp.lt.s32.totalorder %s272, 8
        %s274 = scalar_select %p273, %s272, 8
        %s275 = smul.u32 128, %s274
        %s276 = sadd.s32 %s21, %s22
        %s277 = smul.u32 8, %s276
        %s278 = ssub.s32 15, %s277
        %p279 = scmp.lt.s32.totalorder %s278, 8
        %s280 = scalar_select %p279, %s278, 8
        %s281 = smul.u32 128, %s280
        %p282 = scmp.lt.s32.totalorder %s277, 14
        %s283 = scalar_select %p282, %s277, 14
        %s284 = smul.addr %s283, 8
        %s285 = scalar_lea.vmem %s1, %s284
        %s286 = sadd.s32 %s21, %s22
        %s287 = smul.u32 8, %s286
        %s288 = ssub.s32 15, %s287
        %p289 = scmp.lt.s32.totalorder %s288, 8
        %s290 = scalar_select %p289, %s288, 8
        %s291 = smul.u32 128, %s290
        %s292 = sadd.s32 %s21, %s22
        %s293 = smul.u32 8, %s292
        %s294 = ssub.s32 15, %s293
        %p295 = scmp.lt.s32.totalorder %s294, 8
        %s296 = scalar_select %p295, %s294, 8
        %s297 = smul.u32 128, %s296
        %p298 = scmp.lt.s32.totalorder %s293, 14
        %s299 = scalar_select %p298, %s293, 14
        %s300 = smul.addr %s299, 8
        %s301 = scalar_lea.vmem %s2, %s300
        %s302 = sadd.s32 %s21, %s22
        %s303 = smul.u32 8, %s302
        %s304 = ssub.s32 15, %s303
        %p305 = scmp.lt.s32.totalorder %s304, 8
        %s306 = scalar_select %p305, %s304, 8
        %s307 = smul.u32 128, %s306
        %p308 = scmp.eq.s32.totalorder %s22, 0
        // Predicated region
        $region33: #{tpu_custom_call.1} parent=31 // pred_check
          %p309 = pneg %p308
        $region34: #{tpu_custom_call.1} parent=31 // pred_check_branch
          %311 = sbr.rel (%p309) target = $region36
        $region35: #{tpu_custom_call.1} parent=31 // pred_region
          %vm312 = vcmask 7168
          %313 = vst.msk [vmem:[#allocation2] sm:$0xff] %vm312, 0.0
          %314 = vst.msk [vmem:[#allocation2 + $0x8] sm:$0xff] %vm312, 0.0
          %315 = vst.msk [vmem:[#allocation2 + $0x10] sm:$0xff] %vm312, 0.0
          %316 = vst.msk [vmem:[#allocation2 + $0x18] sm:$0xff] %vm312, 0.0
          %317 = vst.msk [vmem:[#allocation2 + $0x20] sm:$0xff] %vm312, 0.0
          %318 = vst.msk [vmem:[#allocation2 + $0x28] sm:$0xff] %vm312, 0.0
          %319 = vst.msk [vmem:[#allocation2 + $0x30] sm:$0xff] %vm312, 0.0
          %320 = vst.msk [vmem:[#allocation2 + $0x38] sm:$0xff] %vm312, 0.0
        $region36: #{tpu_custom_call.1} parent=31 // pred_fallthru
          _
        %v321 = vld [vmem:[%s269] sm:$0xff]
        %v322 = vld [vmem:[%s269 + $0x8] sm:$0xff]
        %v323 = vld [vmem:[%s269 + $0x10] sm:$0xff]
        %v324 = vld [vmem:[%s269 + $0x18] sm:$0xff]
        %v325 = vld [vmem:[%s269 + $0x20] sm:$0xff]
        %v326 = vld [vmem:[%s269 + $0x28] sm:$0xff]
        %v327 = vld [vmem:[%s269 + $0x30] sm:$0xff]
        %v328 = vld [vmem:[%s269 + $0x38] sm:$0xff]
        %v329 = vld [vmem:[%s285] sm:$0xff]
        %v330 = vld [vmem:[%s285 + $0x8] sm:$0xff]
        %v331 = vld [vmem:[%s285 + $0x10] sm:$0xff]
        %v332 = vld [vmem:[%s285 + $0x18] sm:$0xff]
        %v333 = vld [vmem:[%s285 + $0x20] sm:$0xff]
        %v334 = vld [vmem:[%s285 + $0x28] sm:$0xff]
        %v335 = vld [vmem:[%s285 + $0x30] sm:$0xff]
        %v336 = vld [vmem:[%s285 + $0x38] sm:$0xff]
        %v337 = vld [vmem:[%s301] sm:$0xff]
        %v338 = vld [vmem:[%s301 + $0x8] sm:$0xff]
        %v339 = vld [vmem:[%s301 + $0x10] sm:$0xff]
        %v340 = vld [vmem:[%s301 + $0x18] sm:$0xff]
        %v341 = vld [vmem:[%s301 + $0x20] sm:$0xff]
        %v342 = vld [vmem:[%s301 + $0x28] sm:$0xff]
        %v343 = vld [vmem:[%s301 + $0x30] sm:$0xff]
        %v344 = vld [vmem:[%s301 + $0x38] sm:$0xff]
        %v345 = vsub.f32 %v321, %v329
        %v346 = vsub.f32 %v322, %v330
        %v347 = vsub.f32 %v323, %v331
        %v348 = vsub.f32 %v324, %v332
        %v349 = vsub.f32 %v325, %v333
        %v350 = vsub.f32 %v326, %v334
        %v351 = vsub.f32 %v327, %v335
        %v352 = vsub.f32 %v328, %v336
        %v353 = vadd.f32 %v345, 1e-06
        %v354 = vadd.f32 %v346, 1e-06
        %v355 = vadd.f32 %v347, 1e-06
        %v356 = vadd.f32 %v348, 1e-06
        %v357 = vadd.f32 %v349, 1e-06
        %v358 = vadd.f32 %v350, 1e-06
        %v359 = vadd.f32 %v351, 1e-06
        %v360 = vadd.f32 %v352, 1e-06
        %v361 = vmul.f32 %v353, %v353
        %v362 = vmul.f32 %v354, %v354
        %v363 = vmul.f32 %v355, %v355
        %v364 = vmul.f32 %v356, %v356
        %v365 = vmul.f32 %v357, %v357
        %v366 = vmul.f32 %v358, %v358
        %v367 = vmul.f32 %v359, %v359
        %v368 = vmul.f32 %v360, %v360
        %vm369 = vcmask 261120
        %v370 = vsel %vm369, %v361, 0.0
        %371 = vadd.xlane.f32.xlu0 %v370
        %v372 = vpop.xlane.xlu0 %371
        %v373 = vsel %vm369, %v362, 0.0
        %374 = vadd.xlane.f32.xlu0 %v373
        %v375 = vpop.xlane.xlu0 %374
        %v376 = vsel %vm369, %v363, 0.0
        %377 = vadd.xlane.f32.xlu0 %v376
        %v378 = vpop.xlane.xlu0 %377
        %v379 = vsel %vm369, %v364, 0.0
        %380 = vadd.xlane.f32.xlu0 %v379
        %v381 = vpop.xlane.xlu0 %380
        %v382 = vsel %vm369, %v365, 0.0
        %383 = vadd.xlane.f32.xlu0 %v382
        %v384 = vpop.xlane.xlu0 %383
        %v385 = vsel %vm369, %v366, 0.0
        %386 = vadd.xlane.f32.xlu0 %v385
        %v387 = vpop.xlane.xlu0 %386
        %v388 = vsel %vm369, %v367, 0.0
        %389 = vadd.xlane.f32.xlu0 %v388
        %v390 = vpop.xlane.xlu0 %389
        %v391 = vsel %vm369, %v368, 0.0
        %392 = vadd.xlane.f32.xlu0 %v391
        %v393 = vpop.xlane.xlu0 %392
        %v394 = vrsqrt.pop %v372
        %v395 = vmul.f32 %v372, %v394
        %vm396 = vcmp.eq.f32.partialorder %v372, inf
        %v397 = vsel %vm396, %v372, %v395
        %vm398 = vcmp.eq.f32.partialorder %v372, 0.0
        %v399 = vand.u32 %v372, 2147483648
        %v400 = vsel %vm398, %v399, %v397
        %v401 = vrsqrt.pop %v375
        %v402 = vmul.f32 %v375, %v401
        %vm403 = vcmp.eq.f32.partialorder %v375, inf
        %v404 = vsel %vm403, %v375, %v402
        %vm405 = vcmp.eq.f32.partialorder %v375, 0.0
        %v406 = vand.u32 %v375, 2147483648
        %v407 = vsel %vm405, %v406, %v404
        %v408 = vrsqrt.pop %v378
        %v409 = vmul.f32 %v378, %v408
        %vm410 = vcmp.eq.f32.partialorder %v378, inf
        %v411 = vsel %vm410, %v378, %v409
        %vm412 = vcmp.eq.f32.partialorder %v378, 0.0
        %v413 = vand.u32 %v378, 2147483648
        %v414 = vsel %vm412, %v413, %v411
        %v415 = vrsqrt.pop %v381
        %v416 = vmul.f32 %v381, %v415
        %vm417 = vcmp.eq.f32.partialorder %v381, inf
        %v418 = vsel %vm417, %v381, %v416
        %vm419 = vcmp.eq.f32.partialorder %v381, 0.0
        %v420 = vand.u32 %v381, 2147483648
        %v421 = vsel %vm419, %v420, %v418
        %v422 = vrsqrt.pop %v384
        %v423 = vmul.f32 %v384, %v422
        %vm424 = vcmp.eq.f32.partialorder %v384, inf
        %v425 = vsel %vm424, %v384, %v423
        %vm426 = vcmp.eq.f32.partialorder %v384, 0.0
        %v427 = vand.u32 %v384, 2147483648
        %v428 = vsel %vm426, %v427, %v425
        %v429 = vrsqrt.pop %v387
        %v430 = vmul.f32 %v387, %v429
        %vm431 = vcmp.eq.f32.partialorder %v387, inf
        %v432 = vsel %vm431, %v387, %v430
        %vm433 = vcmp.eq.f32.partialorder %v387, 0.0
        %v434 = vand.u32 %v387, 2147483648
        %v435 = vsel %vm433, %v434, %v432
        %v436 = vrsqrt.pop %v390
        %v437 = vmul.f32 %v390, %v436
        %vm438 = vcmp.eq.f32.partialorder %v390, inf
        %v439 = vsel %vm438, %v390, %v437
        %vm440 = vcmp.eq.f32.partialorder %v390, 0.0
        %v441 = vand.u32 %v390, 2147483648
        %v442 = vsel %vm440, %v441, %v439
        %v443 = vrsqrt.pop %v393
        %v444 = vmul.f32 %v393, %v443
        %vm445 = vcmp.eq.f32.partialorder %v393, inf
        %v446 = vsel %vm445, %v393, %v444
        %vm447 = vcmp.eq.f32.partialorder %v393, 0.0
        %v448 = vand.u32 %v393, 2147483648
        %v449 = vsel %vm447, %v448, %v446
        %v450 = vsub.f32 1.0, %v400
        %v451 = vsub.f32 1.0, %v407
        %v452 = vsub.f32 1.0, %v414
        %v453 = vsub.f32 1.0, %v421
        %v454 = vsub.f32 1.0, %v428
        %v455 = vsub.f32 1.0, %v435
        %v456 = vsub.f32 1.0, %v442
        %v457 = vsub.f32 1.0, %v449
        %v458 = vmax.f32 %v450, 0.0
        %v459 = vmax.f32 %v451, 0.0
        %v460 = vmax.f32 %v452, 0.0
        %v461 = vmax.f32 %v453, 0.0
        %v462 = vmax.f32 %v454, 0.0
        %v463 = vmax.f32 %v455, 0.0
        %v464 = vmax.f32 %v456, 0.0
        %v465 = vmax.f32 %v457, 0.0
        %v466 = vsub.f32 1.0, %v337
        %v467 = vsub.f32 1.0, %v338
        %v468 = vsub.f32 1.0, %v339
        %v469 = vsub.f32 1.0, %v340
        %v470 = vsub.f32 1.0, %v341
        %v471 = vsub.f32 1.0, %v342
        %v472 = vsub.f32 1.0, %v343
        %v473 = vsub.f32 1.0, %v344
        %v474 = vmul.f32 %v466, %v372
        %v475 = vmul.f32 %v467, %v375
        %v476 = vmul.f32 %v468, %v378
        %v477 = vmul.f32 %v469, %v381
        %v478 = vmul.f32 %v470, %v384
        %v479 = vmul.f32 %v471, %v387
        %v480 = vmul.f32 %v472, %v390
        %v481 = vmul.f32 %v473, %v393
        %v482 = vmul.f32 %v458, %v458
        %v483 = vmul.f32 %v459, %v459
        %v484 = vmul.f32 %v460, %v460
        %v485 = vmul.f32 %v461, %v461
        %v486 = vmul.f32 %v462, %v462
        %v487 = vmul.f32 %v463, %v463
        %v488 = vmul.f32 %v464, %v464
        %v489 = vmul.f32 %v465, %v465
        %v490 = vmul.f32 %v337, %v482
        %v491 = vmul.f32 %v338, %v483
        %v492 = vmul.f32 %v339, %v484
        %v493 = vmul.f32 %v340, %v485
        %v494 = vmul.f32 %v341, %v486
        %v495 = vmul.f32 %v342, %v487
        %v496 = vmul.f32 %v343, %v488
        %v497 = vmul.f32 %v344, %v489
        %v498 = vadd.f32 %v474, %v490
        %v499 = vadd.f32 %v475, %v491
        %v500 = vadd.f32 %v476, %v492
        %v501 = vadd.f32 %v477, %v493
        %v502 = vadd.f32 %v478, %v494
        %v503 = vadd.f32 %v479, %v495
        %v504 = vadd.f32 %v480, %v496
        %v505 = vadd.f32 %v481, %v497
        %s506 = sadd.s32 %s21, %s22
        %s507 = smul.u32 %s506, 64
        %v508 = vlaneseq
        %v509 = vshrl.u32 %v508, 7
        %v510 = vadd.s32 %v509, 8
        %v511 = vadd.s32 %v509, 16
        %v512 = vadd.s32 %v509, 24
        %v513 = vadd.s32 %v509, 32
        %v514 = vadd.s32 %v509, 40
        %v515 = vadd.s32 %v509, 48
        %v516 = vadd.s32 %v509, 56
        %v517 = vstv %s507
        %v518 = vadd.s32 %v509, %v517
        %v519 = vadd.s32 %v510, %v517
        %v520 = vadd.s32 %v511, %v517
        %v521 = vadd.s32 %v512, %v517
        %v522 = vadd.s32 %v513, %v517
        %v523 = vadd.s32 %v514, %v517
        %v524 = vadd.s32 %v515, %v517
        %v525 = vadd.s32 %v516, %v517
        %vm526 = vcmp.lt.s32.totalorder %v518, 120
        %vm527 = vcmp.lt.s32.totalorder %v519, 120
        %vm528 = vcmp.lt.s32.totalorder %v520, 120
        %vm529 = vcmp.lt.s32.totalorder %v521, 120
        %vm530 = vcmp.lt.s32.totalorder %v522, 120
        %vm531 = vcmp.lt.s32.totalorder %v523, 120
        %vm532 = vcmp.lt.s32.totalorder %v524, 120
        %vm533 = vcmp.lt.s32.totalorder %v525, 120
        %v534 = vsel %vm526, %v498, 0.0
        %v535 = vsel %vm527, %v499, 0.0
        %v536 = vsel %vm528, %v500, 0.0
        %v537 = vsel %vm529, %v501, 0.0
        %v538 = vsel %vm530, %v502, 0.0
        %v539 = vsel %vm531, %v503, 0.0
        %v540 = vsel %vm532, %v504, 0.0
        %v541 = vsel %vm533, %v505, 0.0
        %v542 = vld [vmem:[#allocation2] sm:$0xff]
        %v543 = vld [vmem:[#allocation2 + $0x8] sm:$0xff]
        %v544 = vld [vmem:[#allocation2 + $0x10] sm:$0xff]
        %v545 = vld [vmem:[#allocation2 + $0x18] sm:$0xff]
        %v546 = vld [vmem:[#allocation2 + $0x20] sm:$0xff]
        %v547 = vld [vmem:[#allocation2 + $0x28] sm:$0xff]
        %v548 = vld [vmem:[#allocation2 + $0x30] sm:$0xff]
        %v549 = vld [vmem:[#allocation2 + $0x38] sm:$0xff]
        %v550 = vadd.f32 %v542, %v534
        %v551 = vadd.f32 %v543, %v535
        %v552 = vadd.f32 %v544, %v536
        %v553 = vadd.f32 %v545, %v537
        %v554 = vadd.f32 %v546, %v538
        %v555 = vadd.f32 %v547, %v539
        %v556 = vadd.f32 %v548, %v540
        %v557 = vadd.f32 %v549, %v541
        %vm558 = vcmask 7168
        %559 = vst.msk [vmem:[#allocation2] sm:$0xff] %vm558, %v550
        %560 = vst.msk [vmem:[#allocation2 + $0x8] sm:$0xff] %vm558, %v551
        %561 = vst.msk [vmem:[#allocation2 + $0x10] sm:$0xff] %vm558, %v552
        %562 = vst.msk [vmem:[#allocation2 + $0x18] sm:$0xff] %vm558, %v553
        %563 = vst.msk [vmem:[#allocation2 + $0x20] sm:$0xff] %vm558, %v554
        %564 = vst.msk [vmem:[#allocation2 + $0x28] sm:$0xff] %vm558, %v555
        %565 = vst.msk [vmem:[#allocation2 + $0x30] sm:$0xff] %vm558, %v556
        %566 = vst.msk [vmem:[#allocation2 + $0x38] sm:$0xff] %vm558, %v557
        // Predicated region
        $region37: #{tpu_custom_call.1} parent=31 // pred_check
          %p567 = pneg %p308
        $region38: #{tpu_custom_call.1} parent=31 // pred_check_branch
          %569 = sbr.rel (%p567) target = $region40
        $region39: #{tpu_custom_call.1} parent=31 // pred_region
          %v570 = vld [vmem:[#allocation2] sm:$0xff]
          %v571 = vld [vmem:[#allocation2 + $0x8] sm:$0xff]
          %v572 = vld [vmem:[#allocation2 + $0x10] sm:$0xff]
          %v573 = vld [vmem:[#allocation2 + $0x18] sm:$0xff]
          %v574 = vld [vmem:[#allocation2 + $0x20] sm:$0xff]
          %v575 = vld [vmem:[#allocation2 + $0x28] sm:$0xff]
          %v576 = vld [vmem:[#allocation2 + $0x30] sm:$0xff]
          %v577 = vld [vmem:[#allocation2 + $0x38] sm:$0xff]
          %v578 = vsel %vm558, %v570, 0.0
          %v579 = vsel %vm558, %v571, 0.0
          %v580 = vadd.f32 %v578, %v579
          %v581 = vsel %vm558, %v572, 0.0
          %v582 = vadd.f32 %v580, %v581
          %v583 = vsel %vm558, %v573, 0.0
          %v584 = vadd.f32 %v582, %v583
          %v585 = vsel %vm558, %v574, 0.0
          %v586 = vadd.f32 %v584, %v585
          %v587 = vsel %vm558, %v575, 0.0
          %v588 = vadd.f32 %v586, %v587
          %v589 = vsel %vm558, %v576, 0.0
          %v590 = vadd.f32 %v588, %v589
          %v591 = vsel %vm558, %v577, 0.0
          %v592 = vadd.f32 %v590, %v591
          %593 = vadd.xlane.f32.xlu0 %v592
          %v594 = vpop.xlane.xlu0 %593
          %v595 = vrot.slane %v594, 4
          %v596 = vadd.f32 %v594, %v595
          %v597 = vrot.slane %v596, 2
          %v598 = vadd.f32 %v596, %v597
          %v599 = vrot.slane %v598, 1
          %v600 = vadd.f32 %v598, %v599
          %s601 = vtos %v600
          %v602 = vstv %s601
          %603 = vst [vmem:[%s259] sm:$0xff] %v602
        $region40: #{tpu_custom_call.1} parent=31 // pred_fallthru
          _
        %s604 = sand.u32 %s121, 1
        %s605 = scalar_lea.sflag [#allocation4], %s604
        %s606 = sand.u32 %s121, 1
        %s607 = smul.addr %s606, 8
        %s608 = scalar_lea.vmem [#allocation3], %s607
        // Predicated region
        $region41: #{tpu_custom_call.1} parent=31 // pred_check
          %p609 = pneg %p131
        $region42: #{tpu_custom_call.1} parent=31 // pred_check_branch
          %611 = sbr.rel (%p609) target = $region44
        $region43: #{tpu_custom_call.1} parent=31 // pred_region
          %s613 = ssub.s32 128, 128
          %614 = vsyncadd %s605, %s613
          %s615 = smul.addr %s21, 128
          %s616 = scalar_lea.hbm %s3, %s615
          %s618 = sshll.u32 %s608, 4
          %s619 = int_to_ptr.vmem [resolvable:$true] %s618
          %621 = dma.vmem_to_hbm [thread:$0]  %s619, 128, %s616, %s605
        $region44: #{tpu_custom_call.1} parent=31 // pred_fallthru
          _
      $region32: #{tpu_custom_call.1} parent=5 // pred_fallthru
        _
      %p622 = scmp.le.s32.totalorder 2, %s12
      // Predicated region
      $region45: #{tpu_custom_call.1} parent=5 // pred_check
        %p623 = pneg %p622
      $region46: #{tpu_custom_call.1} parent=5 // pred_check_branch
        %625 = sbr.rel (%p623) target = $region48
      $region47: #{tpu_custom_call.1} parent=5 // pred_region
        %s626 = ssub.s32 %s12, 2
        // Predicated region
        $region49: #{tpu_custom_call.1} parent=47 // pred_check
          %p627 = pneg %p137
        $region50: #{tpu_custom_call.1} parent=47 // pred_check_branch
          %629 = sbr.rel (%p627) target = $region52
        $region51: #{tpu_custom_call.1} parent=47 // pred_region
          %s630 = sand.u32 %s122, 1
          %s631 = scalar_lea.sflag [#allocation4], %s630
          %s632 = sand.u32 %s122, 1
          %s633 = smul.addr %s632, 8
          %s634 = scalar_lea.vmem [#allocation3], %s633
          %635 = dma.done %s631, 128
        $region52: #{tpu_custom_call.1} parent=47 // pred_fallthru
          _
      $region48: #{tpu_custom_call.1} parent=5 // pred_fallthru
        _
    $region6: #{tpu_custom_call.1} parent=1 // loop_footer
      %s16 = sadd.s32 1, %s12
    $region7: #{tpu_custom_call.1} parent=1 // loop_footer_branch
      %11 = sbr.rel target = $region3
    $region8: #{tpu_custom_call.1} parent=1 // loop_exit
      _
    %636 = vsyncpa [#allocation4], 1
    %s637 = scalar_lea.sflag [#allocation4], 1
    %638 = vsyncpa %s637, 1

</llo_original>
